<compile_context>
chip_gen: v6e
topology: v6e:2x2x1
jax: 0.10.0
libtpu: 0.0.40
codegen_flags: <defaults>
</compile_context>

<pallas_src>
import functools

import jax
import jax.numpy as jnp
from jax.experimental import pallas as pl
from jax.experimental.pallas import tpu as pltpu


_LANES = 128
_NUM_PARTIALS = 3  # intersection, pred-sum, target-sum


def _dice_partial_kernel(pred_ref, targ_ref, out_ref, *, length, need_mask):
    """Accumulates lane-dense per-row partials of (p*t, p, t) into out_ref."""
    j = pl.program_id(1)  # reduction (column) grid axis — last, "arbitrary"

    @pl.when(j == 0)
    def _init():
        out_ref[...] = jnp.zeros_like(out_ref)

    tile_r, tile_l = pred_ref.shape

    if tile_l % _LANES == 0:
        ng = tile_l // _LANES
        col_base = j * tile_l
        lane = jax.lax.broadcasted_iota(jnp.int32, (tile_r, _LANES), 1)

        def chunk(off):
            p = jax.nn.sigmoid(
                pred_ref[:, pl.ds(off, _LANES)].astype(jnp.float32))
            t = targ_ref[:, pl.ds(off, _LANES)].astype(jnp.float32)
            if need_mask:
                valid = (col_base + off + lane) < length
                p = jnp.where(valid, p, 0.0)
                t = jnp.where(valid, t, 0.0)
            out_ref[:, 0 * _LANES:1 * _LANES] += p * t
            out_ref[:, 1 * _LANES:2 * _LANES] += p
            out_ref[:, 2 * _LANES:3 * _LANES] += t

        if ng <= 8:
            # Short fixed trip-count: unroll statically.
            for g in range(ng):
                chunk(g * _LANES)
        else:
            @pl.loop(0, ng)
            def _(g):
                chunk(pl.multiple_of(g * _LANES, _LANES))
    else:
        # Tiny spatial extent (< 128 lanes): single full-extent column block.
        p = jax.nn.sigmoid(pred_ref[...].astype(jnp.float32))
        t = targ_ref[...].astype(jnp.float32)
        out_ref[:, 0:1] += jnp.sum(p * t, axis=-1, keepdims=True)
        out_ref[:, _LANES:_LANES + 1] += jnp.sum(p, axis=-1, keepdims=True)
        out_ref[:, 2 * _LANES:2 * _LANES + 1] += jnp.sum(t, axis=-1,
                                                         keepdims=True)


def _pick_row_tile(rows):
    """Row-block size: a multiple-of-8 divisor of rows (prefer >= 2 blocks so
    v7x megacore can shard the parallel axis); else the full row extent."""
    if rows % 8 != 0:
        return rows
    fallback = None
    for cand in (256, 128, 64, 32, 16, 8):
        if cand <= rows and rows % cand == 0:
            if fallback is None:
                fallback = cand
            if rows // cand >= 2:
                return cand
    return fallback if fallback is not None else rows


def dice_loss(pred, target, smooth=1e-05):
    """pred, target: NCHW arrays (any float / mask dtype). Returns f32 scalar."""
    n, c, h, w = pred.shape
    assert target.shape == pred.shape
    rows = n * c
    length = h * w

    # Flatten to (rows, length) views; keep native dtypes (no HBM up-cast).
    pred2 = pred.reshape(rows, length)
    targ2 = target.reshape(rows, length)

    tile_r = _pick_row_tile(rows)
    n_row_blocks = rows // tile_r

    # Column tile from VMEM budget: ~2 MiB per input block
    # (x2 inputs x2 pipeline buffers ~ 8 MiB), multiple of 128 lanes.
    pair_bytes = pred2.dtype.itemsize + targ2.dtype.itemsize
    target_pair_block_bytes = 4 * 1024 * 1024
    if length >= _LANES:
        floor_len = max(_LANES, (length // _LANES) * _LANES)
        tl = target_pair_block_bytes // (tile_r * pair_bytes)
        tl = max(_LANES, (tl // _LANES) * _LANES)
        tl = min(tl, floor_len)
        n_col_blocks = pl.cdiv(length, tl)
    else:
        tl = length
        n_col_blocks = 1

    need_mask = (n_col_blocks * tl != length)
    grid = (n_row_blocks, n_col_blocks)

    kernel = functools.partial(_dice_partial_kernel,
                               length=length, need_mask=need_mask)

    # Scoped VMEM: 2 inputs x 2 pipeline buffers + resident output block.
    block_bytes = 2 * tile_r * tl * pair_bytes
    vmem_limit = int(min(max(block_bytes + (8 << 20), 32 << 20), 48 << 20))

    partials = pl.pallas_call(
        kernel,
        out_shape=jax.ShapeDtypeStruct((rows, _NUM_PARTIALS * _LANES),
                                       jnp.float32),
        grid_spec=pltpu.PrefetchScalarGridSpec(
            num_scalar_prefetch=0,
            grid=grid,
            in_specs=[
                pl.BlockSpec((tile_r, tl), lambda i, j: (i, j)),
                pl.BlockSpec((tile_r, tl), lambda i, j: (i, j)),
            ],
            out_specs=pl.BlockSpec((tile_r, _NUM_PARTIALS * _LANES),
                                   lambda i, j: (i, 0)),
        ),
        compiler_params=pltpu.CompilerParams(
            dimension_semantics=("parallel", "arbitrary"),
            vmem_limit_bytes=vmem_limit),
    )(pred2, targ2)

    # Tiny epilogue in plain JAX: cross-lane reduce, dice, mean, clamp.
    inter = jnp.sum(partials[:, 0 * _LANES:1 * _LANES], axis=-1)
    psum = jnp.sum(partials[:, 1 * _LANES:2 * _LANES], axis=-1)
    tsum = jnp.sum(partials[:, 2 * _LANES:3 * _LANES], axis=-1)
    dice = (2.0 * inter + smooth) / (psum + tsum + smooth)
    return jnp.clip(1.0 - jnp.mean(dice), 0.0, 1.0)


def _dice_loss_ref(pred, target, smooth=1e-05):
    p = jax.nn.sigmoid(pred.astype(jnp.float32))
    t = target.astype(jnp.float32)
    inter = jnp.sum(p * t, axis=(2, 3))
    dice = (2.0 * inter + smooth) / (
        jnp.sum(p, axis=(2, 3)) + jnp.sum(t, axis=(2, 3)) + smooth)
    return jnp.clip(1.0 - jnp.mean(dice), 0.0, 1.0)


if __name__ == "__main__":
    key = jax.random.PRNGKey(0)
    k1, k2 = jax.random.split(key)

    N, C, H, W = 2, 4, 16, 16
    pred = jax.random.normal(k1, (N, C, H, W), dtype=jnp.float32)
    # binary-ish target, like a segmentation mask
    target = (jax.random.uniform(k2, (N, C, H, W)) > 0.5).astype(jnp.float32)

    loss = jax.jit(dice_loss)(pred, target)
    loss = jax.block_until_ready(loss)

    ref = _dice_loss_ref(pred, target)
    assert jnp.allclose(loss, ref, atol=1e-5, rtol=1e-5), (loss, ref)

    print("KERNEL_OK")
</pallas_src>

<mosaic_0001>
module attributes {stable_mosaic.version = 11 : i64} {
  func.func @_dice_partial_kernel(%arg0: i32, %arg1: i32, %arg2: memref<8x256xf32, #tpu.memory_space<vmem>>, %arg3: memref<8x256xf32, #tpu.memory_space<vmem>>, %arg4: memref<8x384xf32, #tpu.memory_space<vmem>>) attributes {dimension_semantics = [#tpu.dimension_semantics<parallel>, #tpu.dimension_semantics<arbitrary>], iteration_bounds = array<i64: 1, 1>, scalar_prefetch = 0 : i64, scratch_operands = 0 : i64, tpu.core_type = #tpu.core_type<tc>, window_params = [{transform_indices = @transform_0, window_bounds = array<i64: 8, 256>}, {transform_indices = @transform_1, window_bounds = array<i64: 8, 256>}, {transform_indices = @transform_2, window_bounds = array<i64: 8, 384>}]} {
    %c0_i32 = arith.constant 0 : i32
    %0 = arith.cmpi eq, %arg1, %c0_i32 : i32
    %1 = arith.extui %0 : i1 to i32
    %c0_i32_0 = arith.constant 0 : i32
    %2 = arith.cmpi ne, %1, %c0_i32_0 : i32
    scf.if %2 {
      %cst_31 = arith.constant 0.000000e+00 : f32
      %37 = vector.broadcast %cst_31 : f32 to vector<8x384xf32>
      %c0_32 = arith.constant 0 : index
      %c0_33 = arith.constant 0 : index
      %38 = vector.load %arg4[%c0_32, %c0_33] : memref<8x384xf32, #tpu.memory_space<vmem>>, vector<8x384xf32>
      tpu.vector_store %arg4[%c0_32, %c0_33], %37 {strides = array<i32>} : memref<8x384xf32, #tpu.memory_space<vmem>>, vector<8x384xf32>,
    } else {
    }
    %c0 = arith.constant 0 : index
    %c0_1 = arith.constant 0 : index
    %3 = vector.load %arg2[%c0, %c0_1] : memref<8x256xf32, #tpu.memory_space<vmem>>, vector<8x128xf32>
    %4 = arith.negf %3 : vector<8x128xf32>
    %5 = math.exp %4 : vector<8x128xf32>
    %cst = arith.constant 1.000000e+00 : f32
    %6 = vector.broadcast %cst : f32 to vector<8x128xf32>
    %7 = arith.addf %6, %5 : vector<8x128xf32>
    %8 = arith.divf %6, %7 : vector<8x128xf32>
    %c0_2 = arith.constant 0 : index
    %c0_3 = arith.constant 0 : index
    %9 = vector.load %arg3[%c0_2, %c0_3] : memref<8x256xf32, #tpu.memory_space<vmem>>, vector<8x128xf32>
    %c0_4 = arith.constant 0 : index
    %c0_5 = arith.constant 0 : index
    %10 = vector.load %arg4[%c0_4, %c0_5] : memref<8x384xf32, #tpu.memory_space<vmem>>, vector<8x128xf32>
    %11 = arith.mulf %8, %9 : vector<8x128xf32>
    %12 = arith.addf %10, %11 : vector<8x128xf32>
    %c0_6 = arith.constant 0 : index
    %c0_7 = arith.constant 0 : index
    %13 = vector.load %arg4[%c0_6, %c0_7] : memref<8x384xf32, #tpu.memory_space<vmem>>, vector<8x128xf32>
    tpu.vector_store %arg4[%c0_6, %c0_7], %12 {strides = array<i32>} : memref<8x384xf32, #tpu.memory_space<vmem>>, vector<8x128xf32>,
    %c0_8 = arith.constant 0 : index
    %c128 = arith.constant 128 : index
    %14 = vector.load %arg4[%c0_8, %c128] : memref<8x384xf32, #tpu.memory_space<vmem>>, vector<8x128xf32>
    %15 = arith.addf %14, %8 : vector<8x128xf32>
    %c0_9 = arith.constant 0 : index
    %c128_10 = arith.constant 128 : index
    %16 = vector.load %arg4[%c0_9, %c128_10] : memref<8x384xf32, #tpu.memory_space<vmem>>, vector<8x128xf32>
    tpu.vector_store %arg4[%c0_9, %c128_10], %15 {strides = array<i32>} : memref<8x384xf32, #tpu.memory_space<vmem>>, vector<8x128xf32>,
    %c0_11 = arith.constant 0 : index
    %c256 = arith.constant 256 : index
    %17 = vector.load %arg4[%c0_11, %c256] : memref<8x384xf32, #tpu.memory_space<vmem>>, vector<8x128xf32>
    %18 = arith.addf %17, %9 : vector<8x128xf32>
    %c0_12 = arith.constant 0 : index
    %c256_13 = arith.constant 256 : index
    %19 = vector.load %arg4[%c0_12, %c256_13] : memref<8x384xf32, #tpu.memory_space<vmem>>, vector<8x128xf32>
    tpu.vector_store %arg4[%c0_12, %c256_13], %18 {strides = array<i32>} : memref<8x384xf32, #tpu.memory_space<vmem>>, vector<8x128xf32>,
    %c0_14 = arith.constant 0 : index
    %c128_15 = arith.constant 128 : index
    %20 = vector.load %arg2[%c0_14, %c128_15] : memref<8x256xf32, #tpu.memory_space<vmem>>, vector<8x128xf32>
    %21 = arith.negf %20 : vector<8x128xf32>
    %22 = math.exp %21 : vector<8x128xf32>
    %cst_16 = arith.constant 1.000000e+00 : f32
    %23 = vector.broadcast %cst_16 : f32 to vector<8x128xf32>
    %24 = arith.addf %23, %22 : vector<8x128xf32>
    %25 = arith.divf %23, %24 : vector<8x128xf32>
    %c0_17 = arith.constant 0 : index
    %c128_18 = arith.constant 128 : index
    %26 = vector.load %arg3[%c0_17, %c128_18] : memref<8x256xf32, #tpu.memory_space<vmem>>, vector<8x128xf32>
    %c0_19 = arith.constant 0 : index
    %c0_20 = arith.constant 0 : index
    %27 = vector.load %arg4[%c0_19, %c0_20] : memref<8x384xf32, #tpu.memory_space<vmem>>, vector<8x128xf32>
    %28 = arith.mulf %25, %26 : vector<8x128xf32>
    %29 = arith.addf %27, %28 : vector<8x128xf32>
    %c0_21 = arith.constant 0 : index
    %c0_22 = arith.constant 0 : index
    %30 = vector.load %arg4[%c0_21, %c0_22] : memref<8x384xf32, #tpu.memory_space<vmem>>, vector<8x128xf32>
    tpu.vector_store %arg4[%c0_21, %c0_22], %29 {strides = array<i32>} : memref<8x384xf32, #tpu.memory_space<vmem>>, vector<8x128xf32>,
    %c0_23 = arith.constant 0 : index
    %c128_24 = arith.constant 128 : index
    %31 = vector.load %arg4[%c0_23, %c128_24] : memref<8x384xf32, #tpu.memory_space<vmem>>, vector<8x128xf32>
    %32 = arith.addf %31, %25 : vector<8x128xf32>
    %c0_25 = arith.constant 0 : index
    %c128_26 = arith.constant 128 : index
    %33 = vector.load %arg4[%c0_25, %c128_26] : memref<8x384xf32, #tpu.memory_space<vmem>>, vector<8x128xf32>
    tpu.vector_store %arg4[%c0_25, %c128_26], %32 {strides = array<i32>} : memref<8x384xf32, #tpu.memory_space<vmem>>, vector<8x128xf32>,
    %c0_27 = arith.constant 0 : index
    %c256_28 = arith.constant 256 : index
    %34 = vector.load %arg4[%c0_27, %c256_28] : memref<8x384xf32, #tpu.memory_space<vmem>>, vector<8x128xf32>
    %35 = arith.addf %34, %26 : vector<8x128xf32>
    %c0_29 = arith.constant 0 : index
    %c256_30 = arith.constant 256 : index
    %36 = vector.load %arg4[%c0_29, %c256_30] : memref<8x384xf32, #tpu.memory_space<vmem>>, vector<8x128xf32>
    tpu.vector_store %arg4[%c0_29, %c256_30], %35 {strides = array<i32>} : memref<8x384xf32, #tpu.memory_space<vmem>>, vector<8x128xf32>,
    return
  }
  func.func @transform_0(%arg0: i32, %arg1: i32) -> (i32, i32) {
    %c0_i32 = arith.constant 0 : i32
    return %arg0, %arg1 : i32, i32
  }
  func.func @transform_1(%arg0: i32, %arg1: i32) -> (i32, i32) {
    %c0_i32 = arith.constant 0 : i32
    return %arg0, %arg1 : i32, i32
  }
  func.func @transform_2(%arg0: i32, %arg1: i32) -> (i32, i32) {
    %c0_i32 = arith.constant 0 : i32
    %c0_i32_0 = arith.constant 0 : i32
    return %arg0, %c0_i32 : i32, i32
  }
}

</mosaic_0001>

<llo_original>
// kernel: dice_loss.1
$region0: #{dice_loss.1}
  #allocation0 [shape = 'u32[]', space=smem, size = 0x4, offset = 0x4, fixed_abs, tag = 'smem constant byte address 0x4 - core index']
  #allocation1 [shape = 'u32[144,128]{1,0:T(1,128)}', space=vmem, size = 0x12000, scoped, tag = 'internal scratch']
  %s0 = inlined_call_operand.vmem [shape: f32[8,256], index: 0, kind: input, shape index: {}]
  %s1 = inlined_call_operand.vmem [shape: f32[8,256], index: 1, kind: input, shape index: {}]
  %s2 = inlined_call_operand.vmem [shape: f32[8,384], index: 2, kind: output, shape index: {}]
  %s3 = sld [smem:[#allocation0]]
  $region22: #{dice_loss.1} parent=0
    _
  %s5 = ssub.s32 1, %s3
  %s6 = scalar_select 0, %s5, %s3
  // Predicated region
  $region2: #{dice_loss.1} parent=0 // pred_check
    _
  $region3: #{dice_loss.1} parent=0 // pred_check_branch
    %8 = sbr.rel (0) target = $region5
  $region4: #{dice_loss.1} parent=0 // pred_region
    _
  $region5: #{dice_loss.1} parent=0 // pred_fallthru
    _
  // Predicated region
  $region6: #{dice_loss.1} parent=0 // pred_check
    _
  $region7: #{dice_loss.1} parent=0 // pred_check_branch
    %10 = sbr.rel (0) target = $region9
  $region8: #{dice_loss.1} parent=0 // pred_region
    _
  $region9: #{dice_loss.1} parent=0 // pred_fallthru
    _
  %p11 = scmp.eq.s32.totalorder 0, 0
  // Predicated region
  $region10: #{dice_loss.1} parent=0 // pred_check
    %p12 = pneg %p11
  $region11: #{dice_loss.1} parent=0 // pred_check_branch
    %14 = sbr.rel (%p12) target = $region13
  $region12: #{dice_loss.1} parent=0 // pred_region
    %15 = vst [vmem:[%s2] sm:$0xff] 0.0
    %16 = vst [vmem:[%s2 + $0x8] sm:$0xff] 0.0
    %17 = vst [vmem:[%s2 + $0x10] sm:$0xff] 0.0
  $region13: #{dice_loss.1} parent=0 // pred_fallthru
    _
  %v18 = vld [vmem:[%s0] sm:$0xff]
  %v19 = vxor.u32 %v18, 2147483648
  %v20 = vmul.f32 %v19, 1.442695
  %v21 = vpow.pop %v20
  %v22 = vadd.f32 %v21, 1.0
  %v23 = vrcp.pop %v22
  %v24 = vmul.f32 1.0, %v23
  %v25 = vld [vmem:[%s1] sm:$0xff]
  %v26 = vld [vmem:[%s2] sm:$0xff]
  %v27 = vmul.f32 %v24, %v25
  %v28 = vadd.f32 %v26, %v27
  %29 = vst [vmem:[%s2] sm:$0xff] %v28
  %v30 = vld [vmem:[%s2 + $0x8] sm:$0xff]
  %v31 = vadd.f32 %v30, %v24
  %32 = vst [vmem:[%s2 + $0x8] sm:$0xff] %v31
  %v33 = vld [vmem:[%s2 + $0x10] sm:$0xff]
  %v34 = vadd.f32 %v33, %v25
  %35 = vst [vmem:[%s2 + $0x10] sm:$0xff] %v34
  %v36 = vld [vmem:[%s0 + $0x8] sm:$0xff]
  %v37 = vxor.u32 %v36, 2147483648
  %v38 = vmul.f32 %v37, 1.442695
  %v39 = vpow.pop %v38
  %v40 = vadd.f32 %v39, 1.0
  %v41 = vrcp.pop %v40
  %v42 = vmul.f32 1.0, %v41
  %v43 = vld [vmem:[%s1 + $0x8] sm:$0xff]
  %v44 = vld [vmem:[%s2] sm:$0xff]
  %v45 = vmul.f32 %v42, %v43
  %v46 = vadd.f32 %v44, %v45
  %47 = vst [vmem:[%s2] sm:$0xff] %v46
  %v48 = vld [vmem:[%s2 + $0x8] sm:$0xff]
  %v49 = vadd.f32 %v48, %v42
  %50 = vst [vmem:[%s2 + $0x8] sm:$0xff] %v49
  %v51 = vld [vmem:[%s2 + $0x10] sm:$0xff]
  %v52 = vadd.f32 %v51, %v43
  %53 = vst [vmem:[%s2 + $0x10] sm:$0xff] %v52
  // Predicated region
  $region14: #{dice_loss.1} parent=0 // pred_check
    _
  $region15: #{dice_loss.1} parent=0 // pred_check_branch
    %55 = sbr.rel (0) target = $region17
  $region16: #{dice_loss.1} parent=0 // pred_region
    _
  $region17: #{dice_loss.1} parent=0 // pred_fallthru
    _
  // Predicated region
  $region18: #{dice_loss.1} parent=0 // pred_check
    _
  $region19: #{dice_loss.1} parent=0 // pred_check_branch
    %57 = sbr.rel (0) target = $region21
  $region20: #{dice_loss.1} parent=0 // pred_region
    _
  $region21: #{dice_loss.1} parent=0 // pred_fallthru
    _

</llo_original>
